<compile_context>
chip_gen: v5e
topology: v5e:2x2
jax: 0.10.0
libtpu: 0.0.40
codegen_flags: <defaults>
</compile_context>

<pallas_src>
import functools

import jax
import jax.numpy as jnp
from jax.experimental import pallas as pl
from jax.experimental.pallas import tpu as pltpu

_LANE_CANDIDATES = (1024, 512, 256, 128)      # lane-dense widths, largest first
_TARGET_BLOCK_BYTES = 4 * 1024 * 1024         # ~4 MiB per block (~roofline, v7x-safe)
_VMEM_LIMIT_BYTES = 32 * 1024 * 1024          # 2 bufs x (in+out) x 4 MiB = 16 MiB + slack


def _act_kernel(x_ref, o_ref, *, act_type: str, negative_slope: float):
    x = x_ref[...]
    if act_type == "leakyrelu":
        o_ref[...] = jnp.where(x >= 0, x, x * jnp.asarray(negative_slope, x.dtype))
    elif act_type == "relu":
        o_ref[...] = jnp.maximum(x, jnp.zeros_like(x))
    elif act_type == "silu":
        # sigmoid(x) = 1 / (1 + exp(-x)); approximate EUP reciprocal keeps the
        # divide in the otherwise-idle EUP slot (v5e bf16 has no bf16 VPU/EUP).
        one = jnp.asarray(1, x.dtype)
        o_ref[...] = x * pl.reciprocal(one + jnp.exp(-x), approx=True)
    else:
        raise ValueError(f"Unsupported act_type: {act_type}")


def _sublane_tile(itemsize: int) -> int:
    # Native second-minor tile per dtype width: f32 -> 8, bf16 -> 16, int8/fp8 -> 32.
    return {4: 8, 2: 16, 1: 32}.get(itemsize, 8)


def _choose_layout(n: int, itemsize: int):
    """Pick (lane, padded_n, rows, row_block, grid) for a flat tensor of n elems."""
    lane = next((c for c in _LANE_CANDIDATES if n % c == 0), None)
    if lane is None:
        lane = _LANE_CANDIDATES[0]            # ragged fallback: pad to 1024 lanes
    n_pad = pl.cdiv(n, lane) * lane
    rows = n_pad // lane

    sub = _sublane_tile(itemsize)
    target_rows = max(sub, _TARGET_BLOCK_BYTES // (lane * itemsize))

    if rows < 2 * sub:
        # Tiny tensor: one whole-array block (block_shape == full dims is allowed).
        row_block = rows
    else:
        steps = pl.cdiv(rows, target_rows)
        steps = max(2, 2 * pl.cdiv(steps, 2))  # even #steps >= 2: both v7x TCs busy
        row_block = pl.cdiv(pl.cdiv(rows, steps), sub) * sub
    grid = pl.cdiv(rows, row_block)
    return lane, n_pad, rows, row_block, grid


def activation_block(x, act_type: str = "leakyrelu", negative_slope: float = 0.1,
                     inplace: bool = False):
    """Elementwise activation matching ActivationBlock.forward (NCHW in/out)."""
    assert act_type in ("silu", "relu", "leakyrelu"), "Unsupport activation function!"

    orig_shape = x.shape
    dtype = x.dtype
    itemsize = jnp.dtype(dtype).itemsize
    n = x.size

    lane, n_pad, rows, row_block, grid = _choose_layout(n, itemsize)

    flat = x.reshape(-1)                       # bitcast for contiguous layouts
    padded = n_pad != n
    if padded:
        # Rare fallback (n % 128 != 0). 0 -> 0 for all three activations.
        flat = jnp.pad(flat, (0, n_pad - n))
    slab = flat.reshape(rows, lane)

    kernel = functools.partial(
        _act_kernel, act_type=act_type, negative_slope=negative_slope
    )

    cost = pl.CostEstimate(
        flops=2 * n,
        transcendentals=n if act_type == "silu" else 0,
        bytes_accessed=2 * n * itemsize,
    )

    out = pl.pallas_call(
        kernel,
        out_shape=jax.ShapeDtypeStruct((rows, lane), dtype),
        grid_spec=pltpu.PrefetchScalarGridSpec(
            num_scalar_prefetch=0,
            grid=(grid,),
            in_specs=[pl.BlockSpec((row_block, lane), lambda i: (i, 0))],
            out_specs=pl.BlockSpec((row_block, lane), lambda i: (i, 0)),
        ),
        compiler_params=pltpu.CompilerParams(
            dimension_semantics=("parallel",),
            vmem_limit_bytes=_VMEM_LIMIT_BYTES,
        ),
        cost_estimate=cost,
        # Only alias when the caller actually donates the producer's buffer;
        # otherwise XLA would insert a defensive copy (an extra HBM pass).
        input_output_aliases={0: 0} if inplace else {},
    )(slab)

    flat_out = out.reshape(-1)
    if padded:
        flat_out = flat_out[:n]
    return flat_out.reshape(orig_shape)


def _ref_activation(x, act_type: str, negative_slope: float = 0.1):
    if act_type == "leakyrelu":
        return jnp.where(x >= 0, x, x * negative_slope)
    if act_type == "relu":
        return jnp.maximum(x, 0)
    if act_type == "silu":
        return x * jax.nn.sigmoid(x)
    raise ValueError(act_type)


if __name__ == "__main__":
    key = jax.random.PRNGKey(0)
    k1, k2 = jax.random.split(key)
    # NCHW, matching the PyTorch convention for conv-net feature maps.
    x_small = jax.random.normal(k1, (2, 4, 16, 16), dtype=jnp.float32)
    # Ragged YOLO-style shape (n % 128 != 0) to exercise the fallback path.
    x_ragged = jax.random.normal(k2, (2, 255, 13, 13), dtype=jnp.float32)

    checks = []

    for act_type in ("leakyrelu", "relu", "silu"):
        # silu uses the approximate EUP reciprocal -> compare with loose tolerance.
        tol = 2e-2 if act_type == "silu" else 1e-6
        y = jax.block_until_ready(activation_block(x_small, act_type=act_type))
        ok = bool(jnp.allclose(y, _ref_activation(x_small, act_type),
                               atol=tol, rtol=tol))
        checks.append((act_type, ok))

    y = jax.block_until_ready(activation_block(x_ragged, act_type="leakyrelu"))
    checks.append(("leakyrelu_ragged",
                   bool(jnp.allclose(y, _ref_activation(x_ragged, "leakyrelu"),
                                     atol=1e-6, rtol=1e-6))))

    y = jax.block_until_ready(activation_block(x_small, act_type="relu", inplace=True))
    checks.append(("relu_inplace",
                   bool(jnp.allclose(y, _ref_activation(x_small, "relu"),
                                     atol=1e-6, rtol=1e-6))))

    failed = [name for name, ok in checks if not ok]
    if failed:
        print("MISMATCH:", failed)
    else:
        print("KERNEL_OK")
</pallas_src>

<mosaic_0001>
module attributes {stable_mosaic.version = 11 : i64} {
  func.func @_act_kernel(%arg0: i32, %arg1: memref<2x1024xf32, #tpu.memory_space<vmem>>, %arg2: memref<2x1024xf32, #tpu.memory_space<vmem>>) attributes {dimension_semantics = [#tpu.dimension_semantics<parallel>], iteration_bounds = array<i64: 1>, scalar_prefetch = 0 : i64, scratch_operands = 0 : i64, tpu.core_type = #tpu.core_type<tc>, window_params = [{transform_indices = @transform_0, window_bounds = array<i64: 2, 1024>}, {transform_indices = @transform_1, window_bounds = array<i64: 2, 1024>}]} {
    %c0 = arith.constant 0 : index
    %c0_0 = arith.constant 0 : index
    %0 = vector.load %arg1[%c0, %c0_0] : memref<2x1024xf32, #tpu.memory_space<vmem>>, vector<2x1024xf32>
    %cst = arith.constant 0.000000e+00 : f32
    %1 = vector.broadcast %cst : f32 to vector<2x1024xf32>
    %2 = arith.cmpf oge, %0, %1 : vector<2x1024xf32>
    %cst_1 = arith.constant 1.000000e-01 : f32
    %3 = vector.broadcast %cst_1 : f32 to vector<2x1024xf32>
    %4 = arith.mulf %0, %3 : vector<2x1024xf32>
    %5 = arith.select %2, %0, %4 : vector<2x1024xi1>, vector<2x1024xf32>
    %c0_2 = arith.constant 0 : index
    %c0_3 = arith.constant 0 : index
    %6 = vector.load %arg2[%c0_2, %c0_3] : memref<2x1024xf32, #tpu.memory_space<vmem>>, vector<2x1024xf32>
    tpu.vector_store %arg2[%c0_2, %c0_3], %5 {strides = array<i32>} : memref<2x1024xf32, #tpu.memory_space<vmem>>, vector<2x1024xf32>,
    return
  }
  func.func @transform_0(%arg0: i32) -> (i32, i32) {
    %c0_i32 = arith.constant 0 : i32
    %c0_i32_0 = arith.constant 0 : i32
    return %arg0, %c0_i32 : i32, i32
  }
  func.func @transform_1(%arg0: i32) -> (i32, i32) {
    %c0_i32 = arith.constant 0 : i32
    %c0_i32_0 = arith.constant 0 : i32
    return %arg0, %c0_i32 : i32, i32
  }
}

</mosaic_0001>

<llo_original>
// kernel: tpu_custom_call.1
$region0: #{tpu_custom_call.1}
  #allocation0 [shape = 'u32[]', space=smem, size = 0x4, offset = 0x4, fixed_abs, tag = 'smem constant byte address 0x4 - core index']
  #allocation1 [shape = 'u32[72,128]{1,0:T(1,128)}', space=vmem, size = 0x9000, scoped, tag = 'internal scratch']
  %s0 = inlined_call_operand.hbm [shape: f32[2,1024], index: 0, kind: input, shape index: {}]
  %s1 = inlined_call_operand.hbm [shape: f32[2,1024], index: 1, kind: output, shape index: {}]
  %s2 = sld [smem:[#allocation0]]
  $region18: #{tpu_custom_call.1} parent=0
    _
  %s4 = ssub.s32 1, %s2
  %s5 = scalar_select 0, %s4, %s2
  $region1: #{tpu_custom_call.1} parent=0
    #allocation2 [shape = 'u8[8192]{0}', space=vmem, size = 0x2000, scoped, tag = 'input window, operand 0, single buffered']
    #allocation3 [shape = 's32[1]{0}', space=sflag, size = 0x4, scoped, tag = 'scoped memory for tpu_custom_call.1']
    #allocation4 [shape = 's32[1]{0}', space=sflag, size = 0x4, scoped, tag = 'scoped memory for tpu_custom_call.1']
    #allocation5 [shape = 'u8[8192]{0}', space=vmem, size = 0x2000, scoped, tag = 'output window, operand 0, single buffered']
    %6 = vsyncpa [#allocation3], 0
    %7 = vsyncpa [#allocation4], 0
    // Predicated region
    $region2: #{tpu_custom_call.1} parent=1 // pred_check
      _
    $region3: #{tpu_custom_call.1} parent=1 // pred_check_branch
      %9 = sbr.rel (0) target = $region5
    $region4: #{tpu_custom_call.1} parent=1 // pred_region
      %11 = vsyncadd [#allocation3], 0
      %s13 = sshll.u32 %s0, 4
      %s14 = int_to_ptr.hbm [resolvable:$true] %s13
      %s15 = sshll.u32 [#allocation2], 4
      %s16 = int_to_ptr.vmem [resolvable:$true] %s15
      %18 = dma.hbm_to_vmem [thread:$0]  %s14, 256, %s16, [#allocation3]
    $region5: #{tpu_custom_call.1} parent=1 // pred_fallthru
      _
    // Predicated region
    $region6: #{tpu_custom_call.1} parent=1 // pred_check
      _
    $region7: #{tpu_custom_call.1} parent=1 // pred_check_branch
      %20 = sbr.rel (0) target = $region9
    $region8: #{tpu_custom_call.1} parent=1 // pred_region
      %22 = dma.done [#allocation3], 256
    $region9: #{tpu_custom_call.1} parent=1 // pred_fallthru
      _
    %v23 = vld [vmem:[#allocation2] sm:$0xff]
    %v24 = vld [vmem:[#allocation2 + $0x8] sm:$0xff]
    %vm25 = vcmp.ge.f32.partialorder %v23, 0.0
    %vm26 = vcmp.ge.f32.partialorder %v24, 0.0
    %v27 = vmul.f32 %v23, 0.1
    %v28 = vmul.f32 %v24, 0.1
    %v29 = vsel %vm25, %v23, %v27
    %v30 = vsel %vm26, %v24, %v28
    %31 = vst [vmem:[#allocation5] sm:$0xff] %v29
    %32 = vst [vmem:[#allocation5 + $0x8] sm:$0xff] %v30
    // Predicated region
    $region10: #{tpu_custom_call.1} parent=1 // pred_check
      _
    $region11: #{tpu_custom_call.1} parent=1 // pred_check_branch
      %34 = sbr.rel (0) target = $region13
    $region12: #{tpu_custom_call.1} parent=1 // pred_region
      %36 = vsyncadd [#allocation4], 0
      %s38 = sshll.u32 [#allocation5], 4
      %s39 = int_to_ptr.vmem [resolvable:$true] %s38
      %s40 = sshll.u32 %s1, 4
      %s41 = int_to_ptr.hbm [resolvable:$true] %s40
      %43 = dma.vmem_to_hbm [thread:$0]  %s39, 256, %s41, [#allocation4]
    $region13: #{tpu_custom_call.1} parent=1 // pred_fallthru
      _
    // Predicated region
    $region14: #{tpu_custom_call.1} parent=1 // pred_check
      _
    $region15: #{tpu_custom_call.1} parent=1 // pred_check_branch
      %45 = sbr.rel (0) target = $region17
    $region16: #{tpu_custom_call.1} parent=1 // pred_region
      %47 = dma.done [#allocation4], 256
    $region17: #{tpu_custom_call.1} parent=1 // pred_fallthru
      _
    %48 = vsyncpa [#allocation3], 1
    %49 = vsyncpa [#allocation4], 1

</llo_original>
